<compile_context>
chip_gen: v7x
topology: tpu7x:2x2x1
jax: 0.10.0
libtpu: 0.0.40
codegen_flags: <defaults>
</compile_context>

<pallas_src>
import functools

import jax
import jax.numpy as jnp
from jax.experimental import pallas as pl
from jax.experimental.pallas import tpu as pltpu


def _round_up(n: int, m: int) -> int:
    return (n + m - 1) // m * m


def mlp_kernel(x_ref, w1_ref, w2_ref, w3_ref, b_ref, o_ref, *, hp: int, op: int):
    # x_ref:(TM, Din_p) bf16, w*: bf16, b_ref:(1, 2*hp+op) f32, o_ref:(TM, op) f32
    # l1 + ReLU (matmul in bf16, accumulate + elementwise in f32)
    h1 = jnp.dot(x_ref[...], w1_ref[...], preferred_element_type=jnp.float32)
    h1 = jnp.maximum(h1 + b_ref[:, 0:hp], 0.0)
    # l2 + ReLU
    h2 = jnp.dot(h1.astype(jnp.bfloat16), w2_ref[...],
                 preferred_element_type=jnp.float32)
    h2 = jnp.maximum(h2 + b_ref[:, hp:2 * hp], 0.0)
    # l3 (raw logits, matching the PyTorch forward)
    out = jnp.dot(h2.astype(jnp.bfloat16), w3_ref[...],
                  preferred_element_type=jnp.float32)
    o_ref[...] = (out + b_ref[:, 2 * hp:2 * hp + op]).astype(o_ref.dtype)


def neural_net_forward(x, w1, b1, w2, b2, w3, b3, *, tile_m=None):
    """x:(B, Din) f32; weights stored (in, out); biases (1, out). Returns (B, Dout) f32."""
    B, Din = x.shape
    H = w1.shape[1]
    Dout = w3.shape[1]

    # Lane-dense padded dims (multiples of 128) and sublane-aligned batch.
    Din_p = _round_up(Din, 128)
    H_p = _round_up(H, 128)
    Dout_p = _round_up(Dout, 128)

    if tile_m is None:
        tile_m = min(512, _round_up(B, 8))          # small VMEM footprint even on v7x
    B_pad = _round_up(_round_up(B, 8), tile_m)

    # Zero-pad + cast MXU inputs to bf16; biases stay f32 and are packed into one slab.
    xp = jnp.zeros((B_pad, Din_p), jnp.bfloat16).at[:B, :Din].set(
        x.astype(jnp.bfloat16))
    w1p = jnp.zeros((Din_p, H_p), jnp.bfloat16).at[:Din, :H].set(
        w1.astype(jnp.bfloat16))
    w2p = jnp.zeros((H_p, H_p), jnp.bfloat16).at[:H, :H].set(
        w2.astype(jnp.bfloat16))
    w3p = jnp.zeros((H_p, Dout_p), jnp.bfloat16).at[:H, :Dout].set(
        w3.astype(jnp.bfloat16))
    b_all = jnp.zeros((1, 2 * H_p + Dout_p), jnp.float32)
    b_all = b_all.at[:, 0:H].set(b1.astype(jnp.float32))
    b_all = b_all.at[:, H_p:H_p + H].set(b2.astype(jnp.float32))
    b_all = b_all.at[:, 2 * H_p:2 * H_p + Dout].set(b3.astype(jnp.float32))

    grid = (B_pad // tile_m,)
    kernel = functools.partial(mlp_kernel, hp=H_p, op=Dout_p)

    out_padded = pl.pallas_call(
        kernel,
        out_shape=jax.ShapeDtypeStruct((B_pad, Dout_p), jnp.float32),
        grid_spec=pl.GridSpec(
            grid=grid,
            in_specs=[
                pl.BlockSpec((tile_m, Din_p), lambda i: (i, 0)),   # x: tiled over batch
                pl.BlockSpec((Din_p, H_p), lambda i: (0, 0)),      # w1: resident
                pl.BlockSpec((H_p, H_p), lambda i: (0, 0)),        # w2: resident
                pl.BlockSpec((H_p, Dout_p), lambda i: (0, 0)),     # w3: resident
                pl.BlockSpec((1, 2 * H_p + Dout_p), lambda i: (0, 0)),  # packed biases
            ],
            out_specs=pl.BlockSpec((tile_m, Dout_p), lambda i: (i, 0)),
        ),
        compiler_params=pltpu.CompilerParams(
            dimension_semantics=("parallel",),
        ),
    )(xp, w1p, w2p, w3p, b_all)

    return out_padded[:B, :Dout]


def init_params(key, input_size, hidden_size, output_size):
    """Deterministic PyTorch-style uniform(-1/sqrt(fan_in), 1/sqrt(fan_in)) init."""
    ks = jax.random.split(key, 6)

    def lin(kw, kb, fan_in, fan_out):
        bound = 1.0 / jnp.sqrt(jnp.float32(fan_in))
        w = jax.random.uniform(kw, (fan_in, fan_out), jnp.float32, -bound, bound)
        b = jax.random.uniform(kb, (1, fan_out), jnp.float32, -bound, bound)
        return w, b

    w1, b1 = lin(ks[0], ks[1], input_size, hidden_size)
    w2, b2 = lin(ks[2], ks[3], hidden_size, hidden_size)
    w3, b3 = lin(ks[4], ks[5], hidden_size, output_size)
    return w1, b1, w2, b2, w3, b3


if __name__ == "__main__":
    # Small synthetic shapes consistent with the module:
    # input_size = len(all_words) -> 64, hidden_size = 32, output_size = len(tags) -> 8
    batch, input_size, hidden_size, output_size = 8, 64, 32, 8

    key = jax.random.PRNGKey(0)
    kx, kp = jax.random.split(key)

    # Bag-of-words style input (0/1 floats), like the chatbot training data.
    x = (jax.random.uniform(kx, (batch, input_size)) > 0.7).astype(jnp.float32)
    w1, b1, w2, b2, w3, b3 = init_params(kp, input_size, hidden_size, output_size)

    out = neural_net_forward(x, w1, b1, w2, b2, w3, b3)
    out = jax.block_until_ready(out)

    # Reference check in plain f32 JAX (kernel uses bf16 MXU inputs -> looser tol).
    h1 = jnp.maximum(x @ w1 + b1, 0.0)
    h2 = jnp.maximum(h1 @ w2 + b2, 0.0)
    ref = h2 @ w3 + b3
    assert out.shape == (batch, output_size)
    assert jnp.allclose(out, ref, atol=3e-2, rtol=3e-2), (
        float(jnp.max(jnp.abs(out - ref))))

    print("KERNEL_OK")
</pallas_src>

<mosaic_0001>
module attributes {stable_mosaic.version = 11 : i64} {
  func.func @mlp_kernel(%arg0: i32, %arg1: memref<8x128xbf16, #tpu.memory_space<vmem>>, %arg2: memref<128x128xbf16, #tpu.memory_space<vmem>>, %arg3: memref<128x128xbf16, #tpu.memory_space<vmem>>, %arg4: memref<128x128xbf16, #tpu.memory_space<vmem>>, %arg5: memref<1x384xf32, #tpu.memory_space<vmem>>, %arg6: memref<8x128xf32, #tpu.memory_space<vmem>>) attributes {dimension_semantics = [#tpu.dimension_semantics<parallel>], iteration_bounds = array<i64: 1>, scalar_prefetch = 0 : i64, scratch_operands = 0 : i64, tpu.core_type = #tpu.core_type<tc>, window_params = [{transform_indices = @transform_0, window_bounds = array<i64: 8, 128>}, {pipeline_mode = #tpu.pipeline_mode<synchronous>, transform_indices = @transform_1, window_bounds = array<i64: 128, 128>}, {pipeline_mode = #tpu.pipeline_mode<synchronous>, transform_indices = @transform_2, window_bounds = array<i64: 128, 128>}, {pipeline_mode = #tpu.pipeline_mode<synchronous>, transform_indices = @transform_3, window_bounds = array<i64: 128, 128>}, {pipeline_mode = #tpu.pipeline_mode<synchronous>, transform_indices = @transform_4, window_bounds = array<i64: 1, 384>}, {transform_indices = @transform_5, window_bounds = array<i64: 8, 128>}]} {
    %c0 = arith.constant 0 : index
    %c0_0 = arith.constant 0 : index
    %0 = vector.load %arg1[%c0, %c0_0] : memref<8x128xbf16, #tpu.memory_space<vmem>>, vector<8x128xbf16>
    %c0_1 = arith.constant 0 : index
    %c0_2 = arith.constant 0 : index
    %1 = vector.load %arg2[%c0_1, %c0_2] : memref<128x128xbf16, #tpu.memory_space<vmem>>, vector<128x128xbf16>
    %cst = arith.constant dense<0.000000e+00> : vector<8x128xf32>
    %2 = tpu.matmul %0, %1, %cst {dimension_numbers = #tpu.dot_dimension_numbers<[1], [0], [0], [1], [0, 0, 1, 1], [], []>} : vector<8x128xbf16>, vector<128x128xbf16>, vector<8x128xf32> -> vector<8x128xf32>
    %c0_3 = arith.constant 0 : index
    %c0_4 = arith.constant 0 : index
    %3 = vector.load %arg5[%c0_3, %c0_4] : memref<1x384xf32, #tpu.memory_space<vmem>>, vector<1x128xf32>
    %4 = vector.broadcast %3 : vector<1x128xf32> to vector<8x128xf32>
    %5 = arith.addf %2, %4 : vector<8x128xf32>
    %cst_5 = arith.constant 0.000000e+00 : f32
    %6 = vector.broadcast %cst_5 : f32 to vector<8x128xf32>
    %7 = arith.maximumf %5, %6 : vector<8x128xf32>
    %8 = arith.truncf %7 : vector<8x128xf32> to vector<8x128xbf16>
    %c0_6 = arith.constant 0 : index
    %c0_7 = arith.constant 0 : index
    %9 = vector.load %arg3[%c0_6, %c0_7] : memref<128x128xbf16, #tpu.memory_space<vmem>>, vector<128x128xbf16>
    %cst_8 = arith.constant dense<0.000000e+00> : vector<8x128xf32>
    %10 = tpu.matmul %8, %9, %cst_8 {dimension_numbers = #tpu.dot_dimension_numbers<[1], [0], [0], [1], [0, 0, 1, 1], [], []>} : vector<8x128xbf16>, vector<128x128xbf16>, vector<8x128xf32> -> vector<8x128xf32>
    %c0_9 = arith.constant 0 : index
    %c128 = arith.constant 128 : index
    %11 = vector.load %arg5[%c0_9, %c128] : memref<1x384xf32, #tpu.memory_space<vmem>>, vector<1x128xf32>
    %12 = vector.broadcast %11 : vector<1x128xf32> to vector<8x128xf32>
    %13 = arith.addf %10, %12 : vector<8x128xf32>
    %cst_10 = arith.constant 0.000000e+00 : f32
    %14 = vector.broadcast %cst_10 : f32 to vector<8x128xf32>
    %15 = arith.maximumf %13, %14 : vector<8x128xf32>
    %16 = arith.truncf %15 : vector<8x128xf32> to vector<8x128xbf16>
    %c0_11 = arith.constant 0 : index
    %c0_12 = arith.constant 0 : index
    %17 = vector.load %arg4[%c0_11, %c0_12] : memref<128x128xbf16, #tpu.memory_space<vmem>>, vector<128x128xbf16>
    %cst_13 = arith.constant dense<0.000000e+00> : vector<8x128xf32>
    %18 = tpu.matmul %16, %17, %cst_13 {dimension_numbers = #tpu.dot_dimension_numbers<[1], [0], [0], [1], [0, 0, 1, 1], [], []>} : vector<8x128xbf16>, vector<128x128xbf16>, vector<8x128xf32> -> vector<8x128xf32>
    %c0_14 = arith.constant 0 : index
    %c256 = arith.constant 256 : index
    %19 = vector.load %arg5[%c0_14, %c256] : memref<1x384xf32, #tpu.memory_space<vmem>>, vector<1x128xf32>
    %20 = vector.broadcast %19 : vector<1x128xf32> to vector<8x128xf32>
    %21 = arith.addf %18, %20 : vector<8x128xf32>
    %c0_15 = arith.constant 0 : index
    %c0_16 = arith.constant 0 : index
    %22 = vector.load %arg6[%c0_15, %c0_16] : memref<8x128xf32, #tpu.memory_space<vmem>>, vector<8x128xf32>
    tpu.vector_store %arg6[%c0_15, %c0_16], %21 {strides = array<i32>} : memref<8x128xf32, #tpu.memory_space<vmem>>, vector<8x128xf32>,
    return
  }
  func.func @transform_0(%arg0: i32) -> (i32, i32) {
    %c0_i32 = arith.constant 0 : i32
    %c0_i32_0 = arith.constant 0 : i32
    return %arg0, %c0_i32 : i32, i32
  }
  func.func @transform_1(%arg0: i32) -> (i32, i32) {
    %c0_i32 = arith.constant 0 : i32
    %c0_i32_0 = arith.constant 0 : i32
    %c0_i32_1 = arith.constant 0 : i32
    return %c0_i32, %c0_i32_0 : i32, i32
  }
  func.func @transform_2(%arg0: i32) -> (i32, i32) {
    %c0_i32 = arith.constant 0 : i32
    %c0_i32_0 = arith.constant 0 : i32
    %c0_i32_1 = arith.constant 0 : i32
    return %c0_i32, %c0_i32_0 : i32, i32
  }
  func.func @transform_3(%arg0: i32) -> (i32, i32) {
    %c0_i32 = arith.constant 0 : i32
    %c0_i32_0 = arith.constant 0 : i32
    %c0_i32_1 = arith.constant 0 : i32
    return %c0_i32, %c0_i32_0 : i32, i32
  }
  func.func @transform_4(%arg0: i32) -> (i32, i32) {
    %c0_i32 = arith.constant 0 : i32
    %c0_i32_0 = arith.constant 0 : i32
    %c0_i32_1 = arith.constant 0 : i32
    return %c0_i32, %c0_i32_0 : i32, i32
  }
  func.func @transform_5(%arg0: i32) -> (i32, i32) {
    %c0_i32 = arith.constant 0 : i32
    %c0_i32_0 = arith.constant 0 : i32
    return %arg0, %c0_i32 : i32, i32
  }
}

</mosaic_0001>

<llo_original>
// kernel: tpu_custom_call.1
$region0: #{tpu_custom_call.1}
  #allocation0 [shape = 'u32[]', space=smem, size = 0x4, offset = 0x4, fixed_abs, tag = 'smem constant byte address 0x4 - core index']
  #allocation1 [shape = 'u32[144,128]{1,0:T(1,128)}', space=vmem, size = 0x12000, scoped, tag = 'internal scratch']
  %s0 = inlined_call_operand.hbm [shape: bf16[8,128], index: 0, kind: input, shape index: {}]
  %s1 = inlined_call_operand.hbm [shape: bf16[128,128], index: 1, kind: input, shape index: {}]
  %s2 = inlined_call_operand.hbm [shape: bf16[128,128], index: 2, kind: input, shape index: {}]
  %s3 = inlined_call_operand.hbm [shape: bf16[128,128], index: 3, kind: input, shape index: {}]
  %s4 = inlined_call_operand.vmem [shape: f32[1,384], index: 4, kind: input, shape index: {}]
  %s5 = inlined_call_operand.hbm [shape: f32[8,128], index: 5, kind: output, shape index: {}]
  %s6 = sld [smem:[#allocation0]]
  $region46: #{tpu_custom_call.1} parent=0
    _
  %s8 = ssub.s32 1, %s6
  %s9 = scalar_select 0, %s8, %s6
  $region1: #{tpu_custom_call.1} parent=0
    #allocation2 [shape = 'u8[2048]{0}', space=vmem, size = 0x800, scoped, tag = 'input window, operand 0, single buffered']
    #allocation3 [shape = 's32[1]{0}', space=sflag, size = 0x4, scoped, tag = 'scoped memory for tpu_custom_call.1']
    #allocation4 [shape = 's32[1]{0}', space=sflag, size = 0x4, scoped, tag = 'scoped memory for tpu_custom_call.1']
    #allocation5 [shape = 'u8[32768]{0}', space=vmem, size = 0x8000, scoped, tag = 'input window, operand 1, single buffered']
    #allocation6 [shape = 's32[1]{0}', space=sflag, size = 0x4, scoped, tag = 'scoped memory for tpu_custom_call.1']
    #allocation7 [shape = 'u8[32768]{0}', space=vmem, size = 0x8000, scoped, tag = 'input window, operand 2, single buffered']
    #allocation8 [shape = 'u8[32768]{0}', space=vmem, size = 0x8000, scoped, tag = 'input window, operand 3, single buffered']
    #allocation9 [shape = 's32[1]{0}', space=sflag, size = 0x4, scoped, tag = 'scoped memory for tpu_custom_call.1']
    #allocation10 [shape = 'u8[4096]{0}', space=vmem, size = 0x1000, scoped, tag = 'output window, operand 0, single buffered']
    %10 = vsyncpa [#allocation3], 0
    %11 = vsyncpa [#allocation6], 0
    %12 = vsyncpa [#allocation9], 0
    %13 = vsyncpa [#allocation4], 0
    // Predicated region
    $region2: #{tpu_custom_call.1} parent=1 // pred_check
      _
    $region3: #{tpu_custom_call.1} parent=1 // pred_check_branch
      %15 = sbr.rel (0) target = $region5
    $region4: #{tpu_custom_call.1} parent=1 // pred_region
      %s17 = ssub.s32 64, 64
      %18 = vsyncadd [#allocation3], %s17
      %s20 = sshll.u32 [#allocation2], 4
      %s21 = int_to_ptr.vmem [resolvable:$true] %s20
      %23 = dma.hbm_to_vmem [thread:$0]  %s0, 64, %s21, [#allocation3]
    $region5: #{tpu_custom_call.1} parent=1 // pred_fallthru
      _
    // Predicated region
    $region6: #{tpu_custom_call.1} parent=1 // pred_check
      _
    $region7: #{tpu_custom_call.1} parent=1 // pred_check_branch
      %25 = sbr.rel (0) target = $region9
    $region8: #{tpu_custom_call.1} parent=1 // pred_region
      %s27 = ssub.s32 1024, 1024
      %28 = vsyncadd [#allocation6], %s27
      %s29 = sshll.u32 [#allocation5], 4
      %s30 = int_to_ptr.vmem [resolvable:$true] %s29
      %35 = dma.hbm_to_vmem [thread:$0]  %s1, 1024, %s30, [#allocation6], 64, 64, 4
    $region9: #{tpu_custom_call.1} parent=1 // pred_fallthru
      _
    // Predicated region
    $region10: #{tpu_custom_call.1} parent=1 // pred_check
      _
    $region11: #{tpu_custom_call.1} parent=1 // pred_check_branch
      %37 = sbr.rel (0) target = $region13
    $region12: #{tpu_custom_call.1} parent=1 // pred_region
      %s39 = ssub.s32 1024, 1024
      %40 = vsyncadd [#allocation6], %s39
      %s41 = sshll.u32 [#allocation7], 4
      %s42 = int_to_ptr.vmem [resolvable:$true] %s41
      %47 = dma.hbm_to_vmem [thread:$0]  %s2, 1024, %s42, [#allocation6], 64, 64, 4
    $region13: #{tpu_custom_call.1} parent=1 // pred_fallthru
      _
    // Predicated region
    $region14: #{tpu_custom_call.1} parent=1 // pred_check
      _
    $region15: #{tpu_custom_call.1} parent=1 // pred_check_branch
      %49 = sbr.rel (0) target = $region17
    $region16: #{tpu_custom_call.1} parent=1 // pred_region
      %s51 = ssub.s32 1024, 1024
      %52 = vsyncadd [#allocation9], %s51
      %s53 = sshll.u32 [#allocation8], 4
      %s54 = int_to_ptr.vmem [resolvable:$true] %s53
      %59 = dma.hbm_to_vmem [thread:$0]  %s3, 1024, %s54, [#allocation9], 64, 64, 4
    $region17: #{tpu_custom_call.1} parent=1 // pred_fallthru
      _
    // Predicated region
    $region18: #{tpu_custom_call.1} parent=1 // pred_check
      _
    $region19: #{tpu_custom_call.1} parent=1 // pred_check_branch
      %61 = sbr.rel (0) target = $region21
    $region20: #{tpu_custom_call.1} parent=1 // pred_region
      _
    $region21: #{tpu_custom_call.1} parent=1 // pred_fallthru
      _
    // Predicated region
    $region22: #{tpu_custom_call.1} parent=1 // pred_check
      _
    $region23: #{tpu_custom_call.1} parent=1 // pred_check_branch
      %63 = sbr.rel (0) target = $region25
    $region24: #{tpu_custom_call.1} parent=1 // pred_region
      %64 = dma.done [#allocation3], 64
    $region25: #{tpu_custom_call.1} parent=1 // pred_fallthru
      _
    // Predicated region
    $region26: #{tpu_custom_call.1} parent=1 // pred_check
      _
    $region27: #{tpu_custom_call.1} parent=1 // pred_check_branch
      %66 = sbr.rel (0) target = $region29
    $region28: #{tpu_custom_call.1} parent=1 // pred_region
      %67 = dma.done [#allocation6], 1024
    $region29: #{tpu_custom_call.1} parent=1 // pred_fallthru
      _
    // Predicated region
    $region30: #{tpu_custom_call.1} parent=1 // pred_check
      _
    $region31: #{tpu_custom_call.1} parent=1 // pred_check_branch
      %69 = sbr.rel (0) target = $region33
    $region32: #{tpu_custom_call.1} parent=1 // pred_region
      %70 = dma.done [#allocation6], 1024
    $region33: #{tpu_custom_call.1} parent=1 // pred_fallthru
      _
    // Predicated region
    $region34: #{tpu_custom_call.1} parent=1 // pred_check
      _
    $region35: #{tpu_custom_call.1} parent=1 // pred_check_branch
      %72 = sbr.rel (0) target = $region37
    $region36: #{tpu_custom_call.1} parent=1 // pred_region
      %73 = dma.done [#allocation9], 1024
    $region37: #{tpu_custom_call.1} parent=1 // pred_fallthru
      _
    %v75 = vld [vmem:[#allocation2] sm:$0xf]
    %v76 = vld [vmem:[#allocation5] sm:$0xf]
    %v77 = vld [vmem:[#allocation5 + $0x4] sm:$0xf]
    %v78 = vld [vmem:[#allocation5 + $0x8] sm:$0xf]
    %v79 = vld [vmem:[#allocation5 + $0xc] sm:$0xf]
    %v80 = vld [vmem:[#allocation5 + $0x10] sm:$0xf]
    %v81 = vld [vmem:[#allocation5 + $0x14] sm:$0xf]
    %v82 = vld [vmem:[#allocation5 + $0x18] sm:$0xf]
    %v83 = vld [vmem:[#allocation5 + $0x1c] sm:$0xf]
    %v84 = vld [vmem:[#allocation5 + $0x20] sm:$0xf]
    %v85 = vld [vmem:[#allocation5 + $0x24] sm:$0xf]
    %v86 = vld [vmem:[#allocation5 + $0x28] sm:$0xf]
    %v87 = vld [vmem:[#allocation5 + $0x2c] sm:$0xf]
    %v88 = vld [vmem:[#allocation5 + $0x30] sm:$0xf]
    %v89 = vld [vmem:[#allocation5 + $0x34] sm:$0xf]
    %v90 = vld [vmem:[#allocation5 + $0x38] sm:$0xf]
    %v91 = vld [vmem:[#allocation5 + $0x3c] sm:$0xf]
    %v92 = vld [vmem:[%s4] sm:$0x1]
    %v94 = vlaneseq
    %v95 = vshrl.u32 %v94, 7
    %v96 = vsub.s32 0, %v95
    %v97 = vrot.slane %v92, %v96
    %v115 = vunpack.c.l.b16 %v76
    %v116 = vunpack.c.l.b16 %v77
    %v117 = vunpack.c.l.b16 %v78
    %v118 = vunpack.c.l.b16 %v79
    %v119 = vunpack.c.l.b16 %v80
    %v120 = vunpack.c.l.b16 %v81
    %v121 = vunpack.c.l.b16 %v82
    %v122 = vunpack.c.l.b16 %v83
    %v123 = vunpack.c.l.b16 %v84
    %v124 = vunpack.c.l.b16 %v85
    %v125 = vunpack.c.l.b16 %v86
    %v126 = vunpack.c.l.b16 %v87
    %v127 = vunpack.c.l.b16 %v88
    %v128 = vunpack.c.l.b16 %v89
    %v129 = vunpack.c.l.b16 %v90
    %v130 = vunpack.c.l.b16 %v91
    %v131 = vpack.c.b16 %v116, %v115
    %v132 = vpack.c.b16 %v118, %v117
    %v133 = vpack.c.b16 %v120, %v119
    %v134 = vpack.c.b16 %v122, %v121
    %v135 = vpack.c.b16 %v124, %v123
    %v136 = vpack.c.b16 %v126, %v125
    %v137 = vpack.c.b16 %v128, %v127
    %v138 = vpack.c.b16 %v130, %v129
    %147 = vmatprep.subr.bf16.mxu0 0
    %148 = vmatpush1.bf16.msra.mxu0 %v131
    %149 = vmatprep.subr.bf16.mxu0 0
    %150 = vmatpush1.bf16.msra.mxu0 %v132
    %151 = vmatprep.subr.bf16.mxu0 0
    %152 = vmatpush1.bf16.msra.mxu0 %v133
    %153 = vmatprep.subr.bf16.mxu0 0
    %154 = vmatpush1.bf16.msra.mxu0 %v134
    %155 = vmatprep.subr.bf16.mxu0 0
    %156 = vmatpush1.bf16.msra.mxu0 %v135
    %157 = vmatprep.subr.bf16.mxu0 0
    %158 = vmatpush1.bf16.msra.mxu0 %v136
    %159 = vmatprep.subr.bf16.mxu0 0
    %160 = vmatpush1.bf16.msra.mxu0 %v137
    %161 = vmatprep.subr.bf16.mxu0 0
    %162 = vmatpush1.bf16.msra.mxu0 %v138
    %163 = vmatprep.subr.bf16.mxu0 0
    %164 = vmatpush1.bf16.msra.mxu0 0
    %165 = vmatprep.subr.bf16.mxu0 0
    %166 = vmatpush1.bf16.msra.mxu0 0
    %167 = vmatprep.subr.bf16.mxu0 0
    %168 = vmatpush1.bf16.msra.mxu0 0
    %169 = vmatprep.subr.bf16.mxu0 0
    %170 = vmatpush1.bf16.msra.mxu0 0
    %171 = vmatprep.subr.bf16.mxu0 0
    %172 = vmatpush1.bf16.msra.mxu0 0
    %173 = vmatprep.subr.bf16.mxu0 0
    %174 = vmatpush1.bf16.msra.mxu0 0
    %175 = vmatprep.subr.bf16.mxu0 0
    %176 = vmatpush1.bf16.msra.mxu0 0
    %177 = vmatprep.subr.bf16.mxu0 0
    %178 = vmatpush1.bf16.msra.mxu0 0
    %179 = vmatprep.mubr.bf16.mxu0 0
    %180 = vmatmul.mubr.bf16.gmra.mrb[0].mxu0 %v75
    %v181 = vpop.f32.mrb[0].mxu0
    %v182 = vadd.f32 %v97, %v181
    %v183 = vpop.f32.mrb[0].mxu0
    %v184 = vpop.f32.mrb[0].mxu0
    %v185 = vpop.f32.mrb[0].mxu0
    %186 = vdwg.mxu0
    %v187 = vmax.f32 %v182, 0.0
    %v188 = vpack.c.bf16 %v187, %v187
    %v189 = vld [vmem:[#allocation7] sm:$0xf]
    %v190 = vld [vmem:[#allocation7 + $0x4] sm:$0xf]
    %v191 = vld [vmem:[#allocation7 + $0x8] sm:$0xf]
    %v192 = vld [vmem:[#allocation7 + $0xc] sm:$0xf]
    %v193 = vld [vmem:[#allocation7 + $0x10] sm:$0xf]
    %v194 = vld [vmem:[#allocation7 + $0x14] sm:$0xf]
    %v195 = vld [vmem:[#allocation7 + $0x18] sm:$0xf]
    %v196 = vld [vmem:[#allocation7 + $0x1c] sm:$0xf]
    %v197 = vld [vmem:[#allocation7 + $0x20] sm:$0xf]
    %v198 = vld [vmem:[#allocation7 + $0x24] sm:$0xf]
    %v199 = vld [vmem:[#allocation7 + $0x28] sm:$0xf]
    %v200 = vld [vmem:[#allocation7 + $0x2c] sm:$0xf]
    %v201 = vld [vmem:[#allocation7 + $0x30] sm:$0xf]
    %v202 = vld [vmem:[#allocation7 + $0x34] sm:$0xf]
    %v203 = vld [vmem:[#allocation7 + $0x38] sm:$0xf]
    %v204 = vld [vmem:[#allocation7 + $0x3c] sm:$0xf]
    %v205 = vld [vmem:[%s4 + $0x1] sm:$0x1]
    %v207 = vlaneseq
    %v208 = vshrl.u32 %v207, 7
    %v209 = vsub.s32 0, %v208
    %v210 = vrot.slane %v205, %v209
    %v228 = vunpack.c.l.b16 %v189
    %v229 = vunpack.c.l.b16 %v190
    %v230 = vunpack.c.l.b16 %v191
    %v231 = vunpack.c.l.b16 %v192
    %v232 = vunpack.c.l.b16 %v193
    %v233 = vunpack.c.l.b16 %v194
    %v234 = vunpack.c.l.b16 %v195
    %v235 = vunpack.c.l.b16 %v196
    %v236 = vunpack.c.l.b16 %v197
    %v237 = vunpack.c.l.b16 %v198
    %v238 = vunpack.c.l.b16 %v199
    %v239 = vunpack.c.l.b16 %v200
    %v240 = vunpack.c.l.b16 %v201
    %v241 = vunpack.c.l.b16 %v202
    %v242 = vunpack.c.l.b16 %v203
    %v243 = vunpack.c.l.b16 %v204
    %v244 = vpack.c.b16 %v229, %v228
    %v245 = vpack.c.b16 %v231, %v230
    %v246 = vpack.c.b16 %v233, %v232
    %v247 = vpack.c.b16 %v235, %v234
    %v248 = vpack.c.b16 %v237, %v236
    %v249 = vpack.c.b16 %v239, %v238
    %v250 = vpack.c.b16 %v241, %v240
    %v251 = vpack.c.b16 %v243, %v242
    %260 = vmatprep.subr.bf16.mxu0 0
    %261 = vmatpush1.bf16.msra.mxu0 %v244
    %262 = vmatprep.subr.bf16.mxu0 0
    %263 = vmatpush1.bf16.msra.mxu0 %v245
    %264 = vmatprep.subr.bf16.mxu0 0
    %265 = vmatpush1.bf16.msra.mxu0 %v246
    %266 = vmatprep.subr.bf16.mxu0 0
    %267 = vmatpush1.bf16.msra.mxu0 %v247
    %268 = vmatprep.subr.bf16.mxu0 0
    %269 = vmatpush1.bf16.msra.mxu0 %v248
    %270 = vmatprep.subr.bf16.mxu0 0
    %271 = vmatpush1.bf16.msra.mxu0 %v249
    %272 = vmatprep.subr.bf16.mxu0 0
    %273 = vmatpush1.bf16.msra.mxu0 %v250
    %274 = vmatprep.subr.bf16.mxu0 0
    %275 = vmatpush1.bf16.msra.mxu0 %v251
    %276 = vmatprep.subr.bf16.mxu0 0
    %277 = vmatpush1.bf16.msra.mxu0 0
    %278 = vmatprep.subr.bf16.mxu0 0
    %279 = vmatpush1.bf16.msra.mxu0 0
    %280 = vmatprep.subr.bf16.mxu0 0
    %281 = vmatpush1.bf16.msra.mxu0 0
    %282 = vmatprep.subr.bf16.mxu0 0
    %283 = vmatpush1.bf16.msra.mxu0 0
    %284 = vmatprep.subr.bf16.mxu0 0
    %285 = vmatpush1.bf16.msra.mxu0 0
    %286 = vmatprep.subr.bf16.mxu0 0
    %287 = vmatpush1.bf16.msra.mxu0 0
    %288 = vmatprep.subr.bf16.mxu0 0
    %289 = vmatpush1.bf16.msra.mxu0 0
    %290 = vmatprep.subr.bf16.mxu0 0
    %291 = vmatpush1.bf16.msra.mxu0 0
    %292 = vmatprep.mubr.bf16.mxu0 0
    %293 = vmatmul.mubr.bf16.gmra.mrb[0].mxu0 %v188
    %v294 = vpop.f32.mrb[0].mxu0
    %v295 = vadd.f32 %v210, %v294
    %v296 = vpop.f32.mrb[0].mxu0
    %v297 = vpop.f32.mrb[0].mxu0
    %v298 = vpop.f32.mrb[0].mxu0
    %299 = vdwg.mxu0
    %v300 = vmax.f32 %v295, 0.0
    %v301 = vpack.c.bf16 %v300, %v300
    %v302 = vld [vmem:[#allocation8] sm:$0xf]
    %v303 = vld [vmem:[#allocation8 + $0x4] sm:$0xf]
    %v304 = vld [vmem:[#allocation8 + $0x8] sm:$0xf]
    %v305 = vld [vmem:[#allocation8 + $0xc] sm:$0xf]
    %v306 = vld [vmem:[#allocation8 + $0x10] sm:$0xf]
    %v307 = vld [vmem:[#allocation8 + $0x14] sm:$0xf]
    %v308 = vld [vmem:[#allocation8 + $0x18] sm:$0xf]
    %v309 = vld [vmem:[#allocation8 + $0x1c] sm:$0xf]
    %v310 = vld [vmem:[#allocation8 + $0x20] sm:$0xf]
    %v311 = vld [vmem:[#allocation8 + $0x24] sm:$0xf]
    %v312 = vld [vmem:[#allocation8 + $0x28] sm:$0xf]
    %v313 = vld [vmem:[#allocation8 + $0x2c] sm:$0xf]
    %v314 = vld [vmem:[#allocation8 + $0x30] sm:$0xf]
    %v315 = vld [vmem:[#allocation8 + $0x34] sm:$0xf]
    %v316 = vld [vmem:[#allocation8 + $0x38] sm:$0xf]
    %v317 = vld [vmem:[#allocation8 + $0x3c] sm:$0xf]
    %v318 = vld [vmem:[%s4 + $0x2] sm:$0x1]
    %v320 = vlaneseq
    %v321 = vshrl.u32 %v320, 7
    %v322 = vsub.s32 0, %v321
    %v323 = vrot.slane %v318, %v322
    %v341 = vunpack.c.l.b16 %v302
    %v342 = vunpack.c.l.b16 %v303
    %v343 = vunpack.c.l.b16 %v304
    %v344 = vunpack.c.l.b16 %v305
    %v345 = vunpack.c.l.b16 %v306
    %v346 = vunpack.c.l.b16 %v307
    %v347 = vunpack.c.l.b16 %v308
    %v348 = vunpack.c.l.b16 %v309
    %v349 = vunpack.c.l.b16 %v310
    %v350 = vunpack.c.l.b16 %v311
    %v351 = vunpack.c.l.b16 %v312
    %v352 = vunpack.c.l.b16 %v313
    %v353 = vunpack.c.l.b16 %v314
    %v354 = vunpack.c.l.b16 %v315
    %v355 = vunpack.c.l.b16 %v316
    %v356 = vunpack.c.l.b16 %v317
    %v357 = vpack.c.b16 %v342, %v341
    %v358 = vpack.c.b16 %v344, %v343
    %v359 = vpack.c.b16 %v346, %v345
    %v360 = vpack.c.b16 %v348, %v347
    %v361 = vpack.c.b16 %v350, %v349
    %v362 = vpack.c.b16 %v352, %v351
    %v363 = vpack.c.b16 %v354, %v353
    %v364 = vpack.c.b16 %v356, %v355
    %373 = vmatprep.subr.bf16.mxu0 0
    %374 = vmatpush1.bf16.msra.mxu0 %v357
    %375 = vmatprep.subr.bf16.mxu0 0
    %376 = vmatpush1.bf16.msra.mxu0 %v358
    %377 = vmatprep.subr.bf16.mxu0 0
    %378 = vmatpush1.bf16.msra.mxu0 %v359
    %379 = vmatprep.subr.bf16.mxu0 0
    %380 = vmatpush1.bf16.msra.mxu0 %v360
    %381 = vmatprep.subr.bf16.mxu0 0
    %382 = vmatpush1.bf16.msra.mxu0 %v361
    %383 = vmatprep.subr.bf16.mxu0 0
    %384 = vmatpush1.bf16.msra.mxu0 %v362
    %385 = vmatprep.subr.bf16.mxu0 0
    %386 = vmatpush1.bf16.msra.mxu0 %v363
    %387 = vmatprep.subr.bf16.mxu0 0
    %388 = vmatpush1.bf16.msra.mxu0 %v364
    %389 = vmatprep.subr.bf16.mxu0 0
    %390 = vmatpush1.bf16.msra.mxu0 0
    %391 = vmatprep.subr.bf16.mxu0 0
    %392 = vmatpush1.bf16.msra.mxu0 0
    %393 = vmatprep.subr.bf16.mxu0 0
    %394 = vmatpush1.bf16.msra.mxu0 0
    %395 = vmatprep.subr.bf16.mxu0 0
    %396 = vmatpush1.bf16.msra.mxu0 0
    %397 = vmatprep.subr.bf16.mxu0 0
    %398 = vmatpush1.bf16.msra.mxu0 0
    %399 = vmatprep.subr.bf16.mxu0 0
    %400 = vmatpush1.bf16.msra.mxu0 0
    %401 = vmatprep.subr.bf16.mxu0 0
    %402 = vmatpush1.bf16.msra.mxu0 0
    %403 = vmatprep.subr.bf16.mxu0 0
    %404 = vmatpush1.bf16.msra.mxu0 0
    %405 = vmatprep.mubr.bf16.mxu0 0
    %406 = vmatmul.mubr.bf16.gmra.mrb[0].mxu0 %v301
    %v407 = vpop.f32.mrb[0].mxu0
    %v408 = vadd.f32 %v323, %v407
    %v409 = vpop.f32.mrb[0].mxu0
    %v410 = vpop.f32.mrb[0].mxu0
    %v411 = vpop.f32.mrb[0].mxu0
    %412 = vdwg.mxu0
    %413 = vst [vmem:[#allocation10] sm:$0xff] %v408
    // Predicated region
    $region38: #{tpu_custom_call.1} parent=1 // pred_check
      _
    $region39: #{tpu_custom_call.1} parent=1 // pred_check_branch
      %415 = sbr.rel (0) target = $region41
    $region40: #{tpu_custom_call.1} parent=1 // pred_region
      %s417 = ssub.s32 128, 128
      %418 = vsyncadd [#allocation4], %s417
      %s420 = sshll.u32 [#allocation10], 4
      %s421 = int_to_ptr.vmem [resolvable:$true] %s420
      %423 = dma.vmem_to_hbm [thread:$0]  %s421, 128, %s5, [#allocation4]
    $region41: #{tpu_custom_call.1} parent=1 // pred_fallthru
      _
    // Predicated region
    $region42: #{tpu_custom_call.1} parent=1 // pred_check
      _
    $region43: #{tpu_custom_call.1} parent=1 // pred_check_branch
      %425 = sbr.rel (0) target = $region45
    $region44: #{tpu_custom_call.1} parent=1 // pred_region
      %426 = dma.done [#allocation4], 128
    $region45: #{tpu_custom_call.1} parent=1 // pred_fallthru
      _
    %427 = vsyncpa [#allocation3], 1
    %428 = vsyncpa [#allocation6], 1
    %429 = vsyncpa [#allocation9], 1
    %430 = vsyncpa [#allocation4], 1

</llo_original>
